<compile_context>
chip_gen: v7x
topology: tpu7x:2x2x1
jax: 0.10.0
libtpu: 0.0.40
codegen_flags: <defaults>
</compile_context>

<pallas_src>
import functools

import jax
import jax.numpy as jnp
from jax.experimental import pallas as pl
from jax.experimental.pallas import tpu as pltpu

LANE = 128           # TPU vreg lane width: keep everything lane-dense.
BF16 = jnp.bfloat16
F32 = jnp.float32


def _round_up(n, m):
    return ((n + m - 1) // m) * m


def normalize_adj(a):
    # DGL GraphConv norm='both': D_dst^{-1/2} A D_src^{-1/2}.
    # Zero-degree rows/cols of A are all-zero anyway, so clamping the degree
    # to 1 is numerically identical to DGL's inf-norm handling.
    d_in = jnp.maximum(a.sum(axis=1), 1.0)    # per dst node
    d_out = jnp.maximum(a.sum(axis=0), 1.0)   # per src node
    return a * (1.0 / jnp.sqrt(d_in))[:, None] * (1.0 / jnp.sqrt(d_out))[None, :]


# ----------------------------------------------------------------------------
# Fully fused forward (single pallas_call)
# ----------------------------------------------------------------------------
@functools.partial(jax.jit, static_argnames=("canonical_rels", "ntypes"))
def model_forward(params, adjs_norm, x, dec_src, dec_dst, *,
                  canonical_rels, ntypes=("drug", "patient")):
    canonical_rels = tuple(tuple(r) for r in canonical_rels)
    ntypes = tuple(ntypes)
    rel0 = canonical_rels[0][0]

    in_f = params["w1"][rel0].shape[0]
    hid = params["w1"][rel0].shape[1]
    out_f = params["w2"][rel0].shape[1]
    n_classes = params["w_pred"].shape[1]
    hid_pad = _round_up(hid, LANE)
    out_pad = _round_up(out_f, LANE)
    c_pad = _round_up(n_classes, LANE)
    n_edges = int(dec_src.shape[0])
    n_nodes = {t: int(x[t].shape[0]) for t in ntypes}

    # --- static relation bookkeeping ----------------------------------------
    rels_by_src = {}
    for rel, s, _ in canonical_rels:
        rels_by_src.setdefault(s, []).append(rel)
    src_types = list(rels_by_src.keys())
    dst_types = []
    for rel, _, d in canonical_rels:
        if d not in dst_types:
            dst_types.append(d)
    dst_pos = {d: i for i, d in enumerate(dst_types)}
    col_pos = {rel: p for s in src_types
               for p, rel in enumerate(rels_by_src[s])}
    n_dst = len(dst_types)

    # Layer 2 needs features for every relation's source type; the predictor
    # hard-codes drug/patient destinations (matches the PyTorch module).
    assert set(src_types) <= set(dst_types), \
        "every relation source type must receive messages in layer 1"
    assert {"drug", "patient"} <= set(dst_types), \
        "predictor expects 'drug' and 'patient' node embeddings"

    # --- parameter packing (lane-aligned per-relation blocks, bf16) ----------
    def pack_w1(s):
        blocks = []
        for r in rels_by_src[s]:
            blk = jnp.zeros((in_f, hid_pad), F32).at[:, :hid].set(
                params["w1"][r].astype(F32))
            blocks.append(blk)
        return jnp.concatenate(blocks, axis=1).astype(BF16)

    def pack_w2(s):
        blocks = []
        for r in rels_by_src[s]:
            blk = jnp.zeros((hid_pad, out_pad), F32).at[:hid, :out_f].set(
                params["w2"][r].astype(F32))
            blocks.append(blk)
        return jnp.concatenate(blocks, axis=1).astype(BF16)

    w1c = {s: pack_w1(s) for s in src_types}
    w2c = {s: pack_w2(s) for s in src_types}

    # Per-dst-type summed biases, packed into one f32 array:
    #   rows [0, n_dst)        -> layer-1 bias (first `hid` cols used)
    #   rows [n_dst, 2*n_dst)  -> layer-2 bias (first `out_f` cols used)
    bw = max(hid_pad, out_pad)
    b12 = jnp.zeros((2 * n_dst, bw), F32)
    for i, d in enumerate(dst_types):
        b1sum = sum(params["b1"][r] for r, _, dd in canonical_rels if dd == d)
        b2sum = sum(params["b2"][r] for r, _, dd in canonical_rels if dd == d)
        b12 = b12.at[i, :hid].set(b1sum.astype(F32))
        b12 = b12.at[n_dst + i, :out_f].set(b2sum.astype(F32))

    # Predictor weights split into src/dst halves, lane-padded.
    wp = params["w_pred"].astype(F32)
    wp_src = jnp.zeros((out_pad, c_pad), F32).at[:out_f, :n_classes].set(
        wp[:out_f]).astype(BF16)
    wp_dst = jnp.zeros((out_pad, c_pad), F32).at[:out_f, :n_classes].set(
        wp[out_f:]).astype(BF16)
    bp_pad = jnp.zeros((1, c_pad), F32).at[0, :n_classes].set(
        params["b_pred"].astype(F32))

    # One-hot gather matrices for the decoder edges (an out-of-range index
    # just yields an all-zero row, so there is no OOB hazard in the kernel).
    g_src = (dec_src.astype(jnp.int32)[:, None]
             == jnp.arange(n_nodes["drug"], dtype=jnp.int32)[None, :]).astype(BF16)
    g_dst = (dec_dst.astype(jnp.int32)[:, None]
             == jnp.arange(n_nodes["patient"], dtype=jnp.int32)[None, :]).astype(BF16)

    tensor_inputs = (
        [adjs_norm[r].astype(BF16) for r, _, _ in canonical_rels]
        + [x[t].astype(BF16) for t in ntypes]
        + [w1c[s] for s in src_types]
        + [w2c[s] for s in src_types]
        + [b12, g_src, g_dst, wp_src, wp_dst, bp_pad]
    )

    # --- the fused kernel -----------------------------------------------------
    def kernel(*refs):
        it = iter(refs)
        a_refs = {rel: next(it) for rel, _, _ in canonical_rels}
        x_refs = {t: next(it) for t in ntypes}
        w1_refs = {s: next(it) for s in src_types}
        w2_refs = {s: next(it) for s in src_types}
        b12_ref = next(it)
        gsrc_ref = next(it)
        gdst_ref = next(it)
        wp_s_ref = next(it)
        wp_d_ref = next(it)
        bp_ref = next(it)
        out_ref = next(it)

        b12v = b12_ref[...]

        def hetero_layer(feats_bf, w_refs, bias_row0, fd_pad, relu):
            # One batched X@W per source node type covering all its relations;
            # per-relation column blocks are lane-aligned (multiples of 128),
            # so the slices below are free views.
            xw = {s: jnp.dot(feats_bf[s], w_refs[s][...],
                             preferred_element_type=jnp.float32)
                  for s in src_types}
            h = {}
            for rel, s, d in canonical_rels:
                lo = col_pos[rel] * fd_pad
                msg = jnp.dot(a_refs[rel][...],
                              xw[s][:, lo:lo + fd_pad].astype(BF16),
                              preferred_element_type=jnp.float32)
                h[d] = msg if d not in h else h[d] + msg
            out = {}
            for d, v in h.items():
                row = bias_row0 + dst_pos[d]
                v = v + b12v[row:row + 1, :fd_pad]          # f32 bias add
                out[d] = jnp.maximum(v, 0.0) if relu else v
            return out

        feats0 = {t: x_refs[t][...] for t in ntypes}
        h1 = hetero_layer(feats0, w1_refs, 0, hid_pad, relu=True)
        h1_bf = {d: v.astype(BF16) for d, v in h1.items()}
        h2 = hetero_layer(h1_bf, w2_refs, n_dst, out_pad, relu=False)

        # Predictor: one-hot MXU gather of the per-edge endpoint embeddings,
        # then a single lane-dense projection (no per-node score tables,
        # no scalar loop, no VMEM scratch).
        hs = jnp.dot(gsrc_ref[...], h2["drug"].astype(BF16),
                     preferred_element_type=jnp.float32)
        hd = jnp.dot(gdst_ref[...], h2["patient"].astype(BF16),
                     preferred_element_type=jnp.float32)
        out_ref[...] = (
            jnp.dot(hs.astype(BF16), wp_s_ref[...],
                    preferred_element_type=jnp.float32)
            + jnp.dot(hd.astype(BF16), wp_d_ref[...],
                      preferred_element_type=jnp.float32)
            + bp_ref[...])

    # --- cost / VMEM hints ----------------------------------------------------
    flops = 0
    for s in src_types:
        nr = len(rels_by_src[s])
        flops += 2 * n_nodes[s] * in_f * nr * hid_pad       # layer-1 X@W
        flops += 2 * n_nodes[s] * hid_pad * nr * out_pad    # layer-2 X@W
    for rel, s, d in canonical_rels:
        flops += 2 * n_nodes[d] * n_nodes[s] * (hid_pad + out_pad)  # A @ XW
    flops += 2 * n_edges * n_nodes["drug"] * out_pad        # one-hot gathers
    flops += 2 * n_edges * n_nodes["patient"] * out_pad
    flops += 2 * 2 * n_edges * out_pad * c_pad              # final projection

    bytes_accessed = sum(int(v.size) * v.dtype.itemsize for v in tensor_inputs)
    bytes_accessed += n_edges * c_pad * 4
    cost = pl.CostEstimate(flops=int(flops), transcendentals=0,
                           bytes_accessed=int(bytes_accessed))
    vmem_bytes = int(min(96 * 2**20, max(4 * 2**20, 8 * bytes_accessed)))

    in_specs = [pl.BlockSpec(tuple(v.shape), lambda i, nd=v.ndim: (0,) * nd)
                for v in tensor_inputs]

    grid_spec = pltpu.PrefetchScalarGridSpec(
        num_scalar_prefetch=0,
        grid=(1,),
        in_specs=in_specs,
        out_specs=pl.BlockSpec((n_edges, c_pad), lambda i: (0, 0)),
    )

    # TODO(synk): at production graph sizes, tile A_norm (dst-node "parallel"
    # axis to feed v7x's second TensorCore + a src/K "arbitrary" reduction axis
    # with an f32 VMEM accumulator) instead of keeping dense adjacencies fully
    # VMEM-resident; at these toy sizes every operand fits in one block.
    scores_pad = pl.pallas_call(
        kernel,
        grid_spec=grid_spec,
        out_shape=jax.ShapeDtypeStruct((n_edges, c_pad), F32),
        cost_estimate=cost,
        compiler_params=pltpu.CompilerParams(
            dimension_semantics=("arbitrary",),
            vmem_limit_bytes=vmem_bytes),
    )(*tensor_inputs)

    return scores_pad[:, :n_classes]


# ----------------------------------------------------------------------------
# Pure-JAX reference (f32, for validation)
# ----------------------------------------------------------------------------
def model_forward_ref(params, adjs_norm, x, dec_src, dec_dst, canonical_rels):
    def layer(feats, ws, bs, relu):
        contribs = {}
        for rel, s, d in canonical_rels:
            y = adjs_norm[rel] @ (feats[s] @ ws[rel]) + bs[rel]
            contribs.setdefault(d, []).append(y)
        out = {}
        for d, lst in contribs.items():
            v = jnp.sum(jnp.stack(lst, 0), 0)
            out[d] = jnp.maximum(v, 0.0) if relu else v
        return out

    h = layer(x, params["w1"], params["b1"], True)
    h = layer(h, params["w2"], params["b2"], False)
    hs = jnp.take(h["drug"], dec_src, axis=0)
    hd = jnp.take(h["patient"], dec_dst, axis=0)
    return jnp.concatenate([hs, hd], axis=1) @ params["w_pred"] + params["b_pred"]


# ----------------------------------------------------------------------------
if __name__ == "__main__":
    # Small, deterministic synthetic hetero-graph (unequal node counts to
    # exercise rectangular adjacencies).
    in_features, hidden_features, out_features = 8, 16, 8
    n_drug, n_patient, n_dec_edges = 8, 16, 24

    canonical_rels = (
        ("treats", "drug", "patient"),
        ("treated_by", "patient", "drug"),
        ("interacts", "drug", "drug"),
    )
    rel_names = [r for r, _, _ in canonical_rels]
    n_classes = len(rel_names)  # bi_pred=False -> len(rel_names)

    def make_adj(n_dst, n_src, f):
        ii = jnp.arange(n_dst)[:, None]
        jj = jnp.arange(n_src)[None, :]
        return f(ii, jj).astype(jnp.float32)

    adjs = {
        "treats": make_adj(n_patient, n_drug, lambda i, j: (i + 2 * j) % 3 == 0),
        "treated_by": make_adj(n_drug, n_patient, lambda i, j: (2 * i + j) % 3 == 0),
        "interacts": make_adj(n_drug, n_drug, lambda i, j: (i * j + i + 1) % 4 == 0),
    }
    adjs_norm = {k: normalize_adj(v) for k, v in adjs.items()}

    # dec_graph: drug -> patient edges.
    e = jnp.arange(n_dec_edges)
    dec_src = (e % n_drug).astype(jnp.int32)
    dec_dst = ((3 * e + 1) % n_patient).astype(jnp.int32)

    # Deterministic parameters and node features.
    key = jax.random.PRNGKey(0)
    keys = iter(jax.random.split(key, 32))
    params = {
        "w1": {r: 0.1 * jax.random.normal(next(keys), (in_features, hidden_features), jnp.float32)
               for r in rel_names},
        "b1": {r: 0.1 * jax.random.normal(next(keys), (hidden_features,), jnp.float32)
               for r in rel_names},
        "w2": {r: 0.1 * jax.random.normal(next(keys), (hidden_features, out_features), jnp.float32)
               for r in rel_names},
        "b2": {r: 0.1 * jax.random.normal(next(keys), (out_features,), jnp.float32)
               for r in rel_names},
        "w_pred": 0.1 * jax.random.normal(next(keys), (2 * out_features, n_classes), jnp.float32),
        "b_pred": 0.1 * jax.random.normal(next(keys), (n_classes,), jnp.float32),
    }
    x = {
        "drug": jax.random.normal(next(keys), (n_drug, in_features), jnp.float32),
        "patient": jax.random.normal(next(keys), (n_patient, in_features), jnp.float32),
    }

    scores = model_forward(params, adjs_norm, x, dec_src, dec_dst,
                           canonical_rels=canonical_rels)
    scores = jax.block_until_ready(scores)

    ref = model_forward_ref(params, adjs_norm, x, dec_src, dec_dst, canonical_rels)
    assert scores.shape == (n_dec_edges, n_classes)
    # bf16 matmul inputs (with f32 accumulation) vs the pure-f32 reference.
    assert jnp.allclose(scores, ref, atol=5e-2, rtol=5e-2), \
        float(jnp.max(jnp.abs(scores - ref)))

    print("KERNEL_OK")
</pallas_src>

<mosaic_0001>
module attributes {stable_mosaic.version = 11 : i64} {
  func.func @kernel(%arg0: i32, %arg1: memref<16x8xbf16, #tpu.memory_space<vmem>>, %arg2: memref<8x16xbf16, #tpu.memory_space<vmem>>, %arg3: memref<8x8xbf16, #tpu.memory_space<vmem>>, %arg4: memref<8x8xbf16, #tpu.memory_space<vmem>>, %arg5: memref<16x8xbf16, #tpu.memory_space<vmem>>, %arg6: memref<8x256xbf16, #tpu.memory_space<vmem>>, %arg7: memref<8x128xbf16, #tpu.memory_space<vmem>>, %arg8: memref<128x256xbf16, #tpu.memory_space<vmem>>, %arg9: memref<128x128xbf16, #tpu.memory_space<vmem>>, %arg10: memref<4x128xf32, #tpu.memory_space<vmem>>, %arg11: memref<24x8xbf16, #tpu.memory_space<vmem>>, %arg12: memref<24x16xbf16, #tpu.memory_space<vmem>>, %arg13: memref<128x128xbf16, #tpu.memory_space<vmem>>, %arg14: memref<128x128xbf16, #tpu.memory_space<vmem>>, %arg15: memref<1x128xf32, #tpu.memory_space<vmem>>, %arg16: memref<24x128xf32, #tpu.memory_space<vmem>>) attributes {dimension_semantics = [#tpu.dimension_semantics<arbitrary>], iteration_bounds = array<i64: 1>, scalar_prefetch = 0 : i64, scratch_operands = 0 : i64, tpu.core_type = #tpu.core_type<tc>, window_params = [{pipeline_mode = #tpu.pipeline_mode<synchronous>, transform_indices = @transform_0, window_bounds = array<i64: 16, 8>}, {pipeline_mode = #tpu.pipeline_mode<synchronous>, transform_indices = @transform_1, window_bounds = array<i64: 8, 16>}, {pipeline_mode = #tpu.pipeline_mode<synchronous>, transform_indices = @transform_2, window_bounds = array<i64: 8, 8>}, {pipeline_mode = #tpu.pipeline_mode<synchronous>, transform_indices = @transform_3, window_bounds = array<i64: 8, 8>}, {pipeline_mode = #tpu.pipeline_mode<synchronous>, transform_indices = @transform_4, window_bounds = array<i64: 16, 8>}, {pipeline_mode = #tpu.pipeline_mode<synchronous>, transform_indices = @transform_5, window_bounds = array<i64: 8, 256>}, {pipeline_mode = #tpu.pipeline_mode<synchronous>, transform_indices = @transform_6, window_bounds = array<i64: 8, 128>}, {pipeline_mode = #tpu.pipeline_mode<synchronous>, transform_indices = @transform_7, window_bounds = array<i64: 128, 256>}, {pipeline_mode = #tpu.pipeline_mode<synchronous>, transform_indices = @transform_8, window_bounds = array<i64: 128, 128>}, {pipeline_mode = #tpu.pipeline_mode<synchronous>, transform_indices = @transform_9, window_bounds = array<i64: 4, 128>}, {pipeline_mode = #tpu.pipeline_mode<synchronous>, transform_indices = @transform_10, window_bounds = array<i64: 24, 8>}, {pipeline_mode = #tpu.pipeline_mode<synchronous>, transform_indices = @transform_11, window_bounds = array<i64: 24, 16>}, {pipeline_mode = #tpu.pipeline_mode<synchronous>, transform_indices = @transform_12, window_bounds = array<i64: 128, 128>}, {pipeline_mode = #tpu.pipeline_mode<synchronous>, transform_indices = @transform_13, window_bounds = array<i64: 128, 128>}, {pipeline_mode = #tpu.pipeline_mode<synchronous>, transform_indices = @transform_14, window_bounds = array<i64: 1, 128>}, {pipeline_mode = #tpu.pipeline_mode<synchronous>, transform_indices = @transform_15, window_bounds = array<i64: 24, 128>}]} {
    %c0 = arith.constant 0 : index
    %c0_0 = arith.constant 0 : index
    %0 = vector.load %arg10[%c0, %c0_0] : memref<4x128xf32, #tpu.memory_space<vmem>>, vector<4x128xf32>
    %c0_1 = arith.constant 0 : index
    %c0_2 = arith.constant 0 : index
    %1 = vector.load %arg4[%c0_1, %c0_2] : memref<8x8xbf16, #tpu.memory_space<vmem>>, vector<8x8xbf16>
    %c0_3 = arith.constant 0 : index
    %c0_4 = arith.constant 0 : index
    %2 = vector.load %arg5[%c0_3, %c0_4] : memref<16x8xbf16, #tpu.memory_space<vmem>>, vector<16x8xbf16>
    %c0_5 = arith.constant 0 : index
    %c0_6 = arith.constant 0 : index
    %3 = vector.load %arg6[%c0_5, %c0_6] : memref<8x256xbf16, #tpu.memory_space<vmem>>, vector<8x256xbf16>
    %cst = arith.constant dense<0.000000e+00> : vector<8x256xf32>
    %4 = tpu.matmul %1, %3, %cst {dimension_numbers = #tpu.dot_dimension_numbers<[1], [0], [0], [1], [0, 0, 1, 1], [], []>} : vector<8x8xbf16>, vector<8x256xbf16>, vector<8x256xf32> -> vector<8x256xf32>
    %c0_7 = arith.constant 0 : index
    %c0_8 = arith.constant 0 : index
    %5 = vector.load %arg7[%c0_7, %c0_8] : memref<8x128xbf16, #tpu.memory_space<vmem>>, vector<8x128xbf16>
    %cst_9 = arith.constant dense<0.000000e+00> : vector<16x128xf32>
    %6 = tpu.matmul %2, %5, %cst_9 {dimension_numbers = #tpu.dot_dimension_numbers<[1], [0], [0], [1], [0, 0, 1, 1], [], []>} : vector<16x8xbf16>, vector<8x128xbf16>, vector<16x128xf32> -> vector<16x128xf32>
    %c0_10 = arith.constant 0 : index
    %c0_11 = arith.constant 0 : index
    %7 = vector.load %arg1[%c0_10, %c0_11] : memref<16x8xbf16, #tpu.memory_space<vmem>>, vector<16x8xbf16>
    %8 = vector.extract_strided_slice %4 {offsets = [0, 0], sizes = [8, 128], strides = [1, 1]} : vector<8x256xf32> to vector<8x128xf32>
    %9 = arith.truncf %8 : vector<8x128xf32> to vector<8x128xbf16>
    %cst_12 = arith.constant dense<0.000000e+00> : vector<16x128xf32>
    %10 = tpu.matmul %7, %9, %cst_12 {dimension_numbers = #tpu.dot_dimension_numbers<[1], [0], [0], [1], [0, 0, 1, 1], [], []>} : vector<16x8xbf16>, vector<8x128xbf16>, vector<16x128xf32> -> vector<16x128xf32>
    %c0_13 = arith.constant 0 : index
    %c0_14 = arith.constant 0 : index
    %11 = vector.load %arg2[%c0_13, %c0_14] : memref<8x16xbf16, #tpu.memory_space<vmem>>, vector<8x16xbf16>
    %12 = arith.truncf %6 : vector<16x128xf32> to vector<16x128xbf16>
    %cst_15 = arith.constant dense<0.000000e+00> : vector<8x128xf32>
    %13 = tpu.matmul %11, %12, %cst_15 {dimension_numbers = #tpu.dot_dimension_numbers<[1], [0], [0], [1], [0, 0, 1, 1], [], []>} : vector<8x16xbf16>, vector<16x128xbf16>, vector<8x128xf32> -> vector<8x128xf32>
    %c0_16 = arith.constant 0 : index
    %c0_17 = arith.constant 0 : index
    %14 = vector.load %arg3[%c0_16, %c0_17] : memref<8x8xbf16, #tpu.memory_space<vmem>>, vector<8x8xbf16>
    %15 = vector.extract_strided_slice %4 {offsets = [0, 128], sizes = [8, 128], strides = [1, 1]} : vector<8x256xf32> to vector<8x128xf32>
    %16 = arith.truncf %15 : vector<8x128xf32> to vector<8x128xbf16>
    %cst_18 = arith.constant dense<0.000000e+00> : vector<8x128xf32>
    %17 = tpu.matmul %14, %16, %cst_18 {dimension_numbers = #tpu.dot_dimension_numbers<[1], [0], [0], [1], [0, 0, 1, 1], [], []>} : vector<8x8xbf16>, vector<8x128xbf16>, vector<8x128xf32> -> vector<8x128xf32>
    %18 = arith.addf %13, %17 : vector<8x128xf32>
    %19 = vector.extract_strided_slice %0 {offsets = [0, 0], sizes = [1, 128], strides = [1, 1]} : vector<4x128xf32> to vector<1x128xf32>
    %20 = vector.broadcast %19 : vector<1x128xf32> to vector<16x128xf32>
    %21 = arith.addf %10, %20 : vector<16x128xf32>
    %cst_19 = arith.constant 0.000000e+00 : f32
    %22 = vector.broadcast %cst_19 : f32 to vector<16x128xf32>
    %23 = arith.maximumf %21, %22 : vector<16x128xf32>
    %24 = vector.extract_strided_slice %0 {offsets = [1, 0], sizes = [1, 128], strides = [1, 1]} : vector<4x128xf32> to vector<1x128xf32>
    %25 = vector.broadcast %24 : vector<1x128xf32> to vector<8x128xf32>
    %26 = arith.addf %18, %25 : vector<8x128xf32>
    %cst_20 = arith.constant 0.000000e+00 : f32
    %27 = vector.broadcast %cst_20 : f32 to vector<8x128xf32>
    %28 = arith.maximumf %26, %27 : vector<8x128xf32>
    %29 = arith.truncf %23 : vector<16x128xf32> to vector<16x128xbf16>
    %30 = arith.truncf %28 : vector<8x128xf32> to vector<8x128xbf16>
    %c0_21 = arith.constant 0 : index
    %c0_22 = arith.constant 0 : index
    %31 = vector.load %arg8[%c0_21, %c0_22] : memref<128x256xbf16, #tpu.memory_space<vmem>>, vector<128x256xbf16>
    %cst_23 = arith.constant dense<0.000000e+00> : vector<8x256xf32>
    %32 = tpu.matmul %30, %31, %cst_23 {dimension_numbers = #tpu.dot_dimension_numbers<[1], [0], [0], [1], [0, 0, 1, 1], [], []>} : vector<8x128xbf16>, vector<128x256xbf16>, vector<8x256xf32> -> vector<8x256xf32>
    %c0_24 = arith.constant 0 : index
    %c0_25 = arith.constant 0 : index
    %33 = vector.load %arg9[%c0_24, %c0_25] : memref<128x128xbf16, #tpu.memory_space<vmem>>, vector<128x128xbf16>
    %cst_26 = arith.constant dense<0.000000e+00> : vector<16x128xf32>
    %34 = tpu.matmul %29, %33, %cst_26 {dimension_numbers = #tpu.dot_dimension_numbers<[1], [0], [0], [1], [0, 0, 1, 1], [], []>} : vector<16x128xbf16>, vector<128x128xbf16>, vector<16x128xf32> -> vector<16x128xf32>
    %c0_27 = arith.constant 0 : index
    %c0_28 = arith.constant 0 : index
    %35 = vector.load %arg1[%c0_27, %c0_28] : memref<16x8xbf16, #tpu.memory_space<vmem>>, vector<16x8xbf16>
    %36 = vector.extract_strided_slice %32 {offsets = [0, 0], sizes = [8, 128], strides = [1, 1]} : vector<8x256xf32> to vector<8x128xf32>
    %37 = arith.truncf %36 : vector<8x128xf32> to vector<8x128xbf16>
    %cst_29 = arith.constant dense<0.000000e+00> : vector<16x128xf32>
    %38 = tpu.matmul %35, %37, %cst_29 {dimension_numbers = #tpu.dot_dimension_numbers<[1], [0], [0], [1], [0, 0, 1, 1], [], []>} : vector<16x8xbf16>, vector<8x128xbf16>, vector<16x128xf32> -> vector<16x128xf32>
    %c0_30 = arith.constant 0 : index
    %c0_31 = arith.constant 0 : index
    %39 = vector.load %arg2[%c0_30, %c0_31] : memref<8x16xbf16, #tpu.memory_space<vmem>>, vector<8x16xbf16>
    %40 = arith.truncf %34 : vector<16x128xf32> to vector<16x128xbf16>
    %cst_32 = arith.constant dense<0.000000e+00> : vector<8x128xf32>
    %41 = tpu.matmul %39, %40, %cst_32 {dimension_numbers = #tpu.dot_dimension_numbers<[1], [0], [0], [1], [0, 0, 1, 1], [], []>} : vector<8x16xbf16>, vector<16x128xbf16>, vector<8x128xf32> -> vector<8x128xf32>
    %c0_33 = arith.constant 0 : index
    %c0_34 = arith.constant 0 : index
    %42 = vector.load %arg3[%c0_33, %c0_34] : memref<8x8xbf16, #tpu.memory_space<vmem>>, vector<8x8xbf16>
    %43 = vector.extract_strided_slice %32 {offsets = [0, 128], sizes = [8, 128], strides = [1, 1]} : vector<8x256xf32> to vector<8x128xf32>
    %44 = arith.truncf %43 : vector<8x128xf32> to vector<8x128xbf16>
    %cst_35 = arith.constant dense<0.000000e+00> : vector<8x128xf32>
    %45 = tpu.matmul %42, %44, %cst_35 {dimension_numbers = #tpu.dot_dimension_numbers<[1], [0], [0], [1], [0, 0, 1, 1], [], []>} : vector<8x8xbf16>, vector<8x128xbf16>, vector<8x128xf32> -> vector<8x128xf32>
    %46 = arith.addf %41, %45 : vector<8x128xf32>
    %47 = vector.extract_strided_slice %0 {offsets = [2, 0], sizes = [1, 128], strides = [1, 1]} : vector<4x128xf32> to vector<1x128xf32>
    %48 = vector.broadcast %47 : vector<1x128xf32> to vector<16x128xf32>
    %49 = arith.addf %38, %48 : vector<16x128xf32>
    %50 = vector.extract_strided_slice %0 {offsets = [3, 0], sizes = [1, 128], strides = [1, 1]} : vector<4x128xf32> to vector<1x128xf32>
    %51 = vector.broadcast %50 : vector<1x128xf32> to vector<8x128xf32>
    %52 = arith.addf %46, %51 : vector<8x128xf32>
    %c0_36 = arith.constant 0 : index
    %c0_37 = arith.constant 0 : index
    %53 = vector.load %arg11[%c0_36, %c0_37] : memref<24x8xbf16, #tpu.memory_space<vmem>>, vector<24x8xbf16>
    %54 = arith.truncf %52 : vector<8x128xf32> to vector<8x128xbf16>
    %cst_38 = arith.constant dense<0.000000e+00> : vector<24x128xf32>
    %55 = tpu.matmul %53, %54, %cst_38 {dimension_numbers = #tpu.dot_dimension_numbers<[1], [0], [0], [1], [0, 0, 1, 1], [], []>} : vector<24x8xbf16>, vector<8x128xbf16>, vector<24x128xf32> -> vector<24x128xf32>
    %c0_39 = arith.constant 0 : index
    %c0_40 = arith.constant 0 : index
    %56 = vector.load %arg12[%c0_39, %c0_40] : memref<24x16xbf16, #tpu.memory_space<vmem>>, vector<24x16xbf16>
    %57 = arith.truncf %49 : vector<16x128xf32> to vector<16x128xbf16>
    %cst_41 = arith.constant dense<0.000000e+00> : vector<24x128xf32>
    %58 = tpu.matmul %56, %57, %cst_41 {dimension_numbers = #tpu.dot_dimension_numbers<[1], [0], [0], [1], [0, 0, 1, 1], [], []>} : vector<24x16xbf16>, vector<16x128xbf16>, vector<24x128xf32> -> vector<24x128xf32>
    %59 = arith.truncf %55 : vector<24x128xf32> to vector<24x128xbf16>
    %c0_42 = arith.constant 0 : index
    %c0_43 = arith.constant 0 : index
    %60 = vector.load %arg13[%c0_42, %c0_43] : memref<128x128xbf16, #tpu.memory_space<vmem>>, vector<128x128xbf16>
    %cst_44 = arith.constant dense<0.000000e+00> : vector<24x128xf32>
    %61 = tpu.matmul %59, %60, %cst_44 {dimension_numbers = #tpu.dot_dimension_numbers<[1], [0], [0], [1], [0, 0, 1, 1], [], []>} : vector<24x128xbf16>, vector<128x128xbf16>, vector<24x128xf32> -> vector<24x128xf32>
    %62 = arith.truncf %58 : vector<24x128xf32> to vector<24x128xbf16>
    %c0_45 = arith.constant 0 : index
    %c0_46 = arith.constant 0 : index
    %63 = vector.load %arg14[%c0_45, %c0_46] : memref<128x128xbf16, #tpu.memory_space<vmem>>, vector<128x128xbf16>
    %cst_47 = arith.constant dense<0.000000e+00> : vector<24x128xf32>
    %64 = tpu.matmul %62, %63, %cst_47 {dimension_numbers = #tpu.dot_dimension_numbers<[1], [0], [0], [1], [0, 0, 1, 1], [], []>} : vector<24x128xbf16>, vector<128x128xbf16>, vector<24x128xf32> -> vector<24x128xf32>
    %65 = arith.addf %61, %64 : vector<24x128xf32>
    %c0_48 = arith.constant 0 : index
    %c0_49 = arith.constant 0 : index
    %66 = vector.load %arg15[%c0_48, %c0_49] : memref<1x128xf32, #tpu.memory_space<vmem>>, vector<1x128xf32>
    %67 = vector.broadcast %66 : vector<1x128xf32> to vector<24x128xf32>
    %68 = arith.addf %65, %67 : vector<24x128xf32>
    %c0_50 = arith.constant 0 : index
    %c0_51 = arith.constant 0 : index
    %69 = vector.load %arg16[%c0_50, %c0_51] : memref<24x128xf32, #tpu.memory_space<vmem>>, vector<24x128xf32>
    tpu.vector_store %arg16[%c0_50, %c0_51], %68 {strides = array<i32>} : memref<24x128xf32, #tpu.memory_space<vmem>>, vector<24x128xf32>,
    return
  }
  func.func @transform_0(%arg0: i32) -> (i32, i32) {
    %c0_i32 = arith.constant 0 : i32
    %c0_i32_0 = arith.constant 0 : i32
    %c0_i32_1 = arith.constant 0 : i32
    return %c0_i32, %c0_i32_0 : i32, i32
  }
  func.func @transform_1(%arg0: i32) -> (i32, i32) {
    %c0_i32 = arith.constant 0 : i32
    %c0_i32_0 = arith.constant 0 : i32
    %c0_i32_1 = arith.constant 0 : i32
    return %c0_i32, %c0_i32_0 : i32, i32
  }
  func.func @transform_2(%arg0: i32) -> (i32, i32) {
    %c0_i32 = arith.constant 0 : i32
    %c0_i32_0 = arith.constant 0 : i32
    %c0_i32_1 = arith.constant 0 : i32
    return %c0_i32, %c0_i32_0 : i32, i32
  }
  func.func @transform_3(%arg0: i32) -> (i32, i32) {
    %c0_i32 = arith.constant 0 : i32
    %c0_i32_0 = arith.constant 0 : i32
    %c0_i32_1 = arith.constant 0 : i32
    return %c0_i32, %c0_i32_0 : i32, i32
  }
  func.func @transform_4(%arg0: i32) -> (i32, i32) {
    %c0_i32 = arith.constant 0 : i32
    %c0_i32_0 = arith.constant 0 : i32
    %c0_i32_1 = arith.constant 0 : i32
    return %c0_i32, %c0_i32_0 : i32, i32
  }
  func.func @transform_5(%arg0: i32) -> (i32, i32) {
    %c0_i32 = arith.constant 0 : i32
    %c0_i32_0 = arith.constant 0 : i32
    %c0_i32_1 = arith.constant 0 : i32
    return %c0_i32, %c0_i32_0 : i32, i32
  }
  func.func @transform_6(%arg0: i32) -> (i32, i32) {
    %c0_i32 = arith.constant 0 : i32
    %c0_i32_0 = arith.constant 0 : i32
    %c0_i32_1 = arith.constant 0 : i32
    return %c0_i32, %c0_i32_0 : i32, i32
  }
  func.func @transform_7(%arg0: i32) -> (i32, i32) {
    %c0_i32 = arith.constant 0 : i32
    %c0_i32_0 = arith.constant 0 : i32
    %c0_i32_1 = arith.constant 0 : i32
    return %c0_i32, %c0_i32_0 : i32, i32
  }
  func.func @transform_8(%arg0: i32) -> (i32, i32) {
    %c0_i32 = arith.constant 0 : i32
    %c0_i32_0 = arith.constant 0 : i32
    %c0_i32_1 = arith.constant 0 : i32
    return %c0_i32, %c0_i32_0 : i32, i32
  }
  func.func @transform_9(%arg0: i32) -> (i32, i32) {
    %c0_i32 = arith.constant 0 : i32
    %c0_i32_0 = arith.constant 0 : i32
    %c0_i32_1 = arith.constant 0 : i32
    return %c0_i32, %c0_i32_0 : i32, i32
  }
  func.func @transform_10(%arg0: i32) -> (i32, i32) {
    %c0_i32 = arith.constant 0 : i32
    %c0_i32_0 = arith.constant 0 : i32
    %c0_i32_1 = arith.constant 0 : i32
    return %c0_i32, %c0_i32_0 : i32, i32
  }
  func.func @transform_11(%arg0: i32) -> (i32, i32) {
    %c0_i32 = arith.constant 0 : i32
    %c0_i32_0 = arith.constant 0 : i32
    %c0_i32_1 = arith.constant 0 : i32
    return %c0_i32, %c0_i32_0 : i32, i32
  }
  func.func @transform_12(%arg0: i32) -> (i32, i32) {
    %c0_i32 = arith.constant 0 : i32
    %c0_i32_0 = arith.constant 0 : i32
    %c0_i32_1 = arith.constant 0 : i32
    return %c0_i32, %c0_i32_0 : i32, i32
  }
  func.func @transform_13(%arg0: i32) -> (i32, i32) {
    %c0_i32 = arith.constant 0 : i32
    %c0_i32_0 = arith.constant 0 : i32
    %c0_i32_1 = arith.constant 0 : i32
    return %c0_i32, %c0_i32_0 : i32, i32
  }
  func.func @transform_14(%arg0: i32) -> (i32, i32) {
    %c0_i32 = arith.constant 0 : i32
    %c0_i32_0 = arith.constant 0 : i32
    %c0_i32_1 = arith.constant 0 : i32
    return %c0_i32, %c0_i32_0 : i32, i32
  }
  func.func @transform_15(%arg0: i32) -> (i32, i32) {
    %c0_i32 = arith.constant 0 : i32
    %c0_i32_0 = arith.constant 0 : i32
    %c0_i32_1 = arith.constant 0 : i32
    return %c0_i32, %c0_i32_0 : i32, i32
  }
}

</mosaic_0001>

<llo_original>
// kernel: model_forward.1
$region0: #{model_forward.1}
  #allocation0 [shape = 'u32[]', space=smem, size = 0x4, offset = 0x4, fixed_abs, tag = 'smem constant byte address 0x4 - core index']
  #allocation1 [shape = 'u32[144,128]{1,0:T(1,128)}', space=vmem, size = 0x12000, scoped, tag = 'internal scratch']
  %s0 = inlined_call_operand.vmem [shape: bf16[16,8], index: 0, kind: input, shape index: {}]
  %s1 = inlined_call_operand.vmem [shape: bf16[8,16], index: 1, kind: input, shape index: {}]
  %s2 = inlined_call_operand.vmem [shape: bf16[8,8], index: 2, kind: input, shape index: {}]
  %s3 = inlined_call_operand.vmem [shape: bf16[8,8], index: 3, kind: input, shape index: {}]
  %s4 = inlined_call_operand.vmem [shape: bf16[16,8], index: 4, kind: input, shape index: {}]
  %s5 = inlined_call_operand.vmem [shape: bf16[8,256], index: 5, kind: input, shape index: {}]
  %s6 = inlined_call_operand.vmem [shape: bf16[8,128], index: 6, kind: input, shape index: {}]
  %s7 = inlined_call_operand.vmem [shape: bf16[128,256], index: 7, kind: input, shape index: {}]
  %s8 = inlined_call_operand.vmem [shape: bf16[128,128], index: 8, kind: input, shape index: {}]
  %s9 = inlined_call_operand.vmem [shape: f32[4,128], index: 9, kind: input, shape index: {}]
  %s10 = inlined_call_operand.vmem [shape: bf16[24,8], index: 10, kind: input, shape index: {}]
  %s11 = inlined_call_operand.vmem [shape: bf16[24,16], index: 11, kind: input, shape index: {}]
  %s12 = inlined_call_operand.vmem [shape: bf16[128,128], index: 12, kind: input, shape index: {}]
  %s13 = inlined_call_operand.vmem [shape: bf16[128,128], index: 13, kind: input, shape index: {}]
  %s14 = inlined_call_operand.vmem [shape: f32[1,128], index: 14, kind: input, shape index: {}]
  %s15 = inlined_call_operand.vmem [shape: f32[24,128], index: 15, kind: output, shape index: {}]
  %s16 = sld [smem:[#allocation0]]
  $region70: #{model_forward.1} parent=0
    _
  %s18 = ssub.s32 1, %s16
  %s19 = scalar_select 0, %s18, %s16
  // Predicated region
  $region2: #{model_forward.1} parent=0 // pred_check
    _
  $region3: #{model_forward.1} parent=0 // pred_check_branch
    %21 = sbr.rel (0) target = $region5
  $region4: #{model_forward.1} parent=0 // pred_region
    _
  $region5: #{model_forward.1} parent=0 // pred_fallthru
    _
  // Predicated region
  $region6: #{model_forward.1} parent=0 // pred_check
    _
  $region7: #{model_forward.1} parent=0 // pred_check_branch
    %23 = sbr.rel (0) target = $region9
  $region8: #{model_forward.1} parent=0 // pred_region
    _
  $region9: #{model_forward.1} parent=0 // pred_fallthru
    _
  // Predicated region
  $region10: #{model_forward.1} parent=0 // pred_check
    _
  $region11: #{model_forward.1} parent=0 // pred_check_branch
    %25 = sbr.rel (0) target = $region13
  $region12: #{model_forward.1} parent=0 // pred_region
    _
  $region13: #{model_forward.1} parent=0 // pred_fallthru
    _
  // Predicated region
  $region14: #{model_forward.1} parent=0 // pred_check
    _
  $region15: #{model_forward.1} parent=0 // pred_check_branch
    %27 = sbr.rel (0) target = $region17
  $region16: #{model_forward.1} parent=0 // pred_region
    _
  $region17: #{model_forward.1} parent=0 // pred_fallthru
    _
  // Predicated region
  $region18: #{model_forward.1} parent=0 // pred_check
    _
  $region19: #{model_forward.1} parent=0 // pred_check_branch
    %29 = sbr.rel (0) target = $region21
  $region20: #{model_forward.1} parent=0 // pred_region
    _
  $region21: #{model_forward.1} parent=0 // pred_fallthru
    _
  // Predicated region
  $region22: #{model_forward.1} parent=0 // pred_check
    _
  $region23: #{model_forward.1} parent=0 // pred_check_branch
    %31 = sbr.rel (0) target = $region25
  $region24: #{model_forward.1} parent=0 // pred_region
    _
  $region25: #{model_forward.1} parent=0 // pred_fallthru
    _
  // Predicated region
  $region26: #{model_forward.1} parent=0 // pred_check
    _
  $region27: #{model_forward.1} parent=0 // pred_check_branch
    %33 = sbr.rel (0) target = $region29
  $region28: #{model_forward.1} parent=0 // pred_region
    _
  $region29: #{model_forward.1} parent=0 // pred_fallthru
    _
  // Predicated region
  $region30: #{model_forward.1} parent=0 // pred_check
    _
  $region31: #{model_forward.1} parent=0 // pred_check_branch
    %35 = sbr.rel (0) target = $region33
  $region32: #{model_forward.1} parent=0 // pred_region
    _
  $region33: #{model_forward.1} parent=0 // pred_fallthru
    _
  // Predicated region
  $region34: #{model_forward.1} parent=0 // pred_check
    _
  $region35: #{model_forward.1} parent=0 // pred_check_branch
    %37 = sbr.rel (0) target = $region37
  $region36: #{model_forward.1} parent=0 // pred_region
    _
  $region37: #{model_forward.1} parent=0 // pred_fallthru
    _
  // Predicated region
  $region38: #{model_forward.1} parent=0 // pred_check
    _
  $region39: #{model_forward.1} parent=0 // pred_check_branch
    %39 = sbr.rel (0) target = $region41
  $region40: #{model_forward.1} parent=0 // pred_region
    _
  $region41: #{model_forward.1} parent=0 // pred_fallthru
    _
  // Predicated region
  $region42: #{model_forward.1} parent=0 // pred_check
    _
  $region43: #{model_forward.1} parent=0 // pred_check_branch
    %41 = sbr.rel (0) target = $region45
  $region44: #{model_forward.1} parent=0 // pred_region
    _
  $region45: #{model_forward.1} parent=0 // pred_fallthru
    _
  // Predicated region
  $region46: #{model_forward.1} parent=0 // pred_check
    _
  $region47: #{model_forward.1} parent=0 // pred_check_branch
    %43 = sbr.rel (0) target = $region49
  $region48: #{model_forward.1} parent=0 // pred_region
    _
  $region49: #{model_forward.1} parent=0 // pred_fallthru
    _
  // Predicated region
  $region50: #{model_forward.1} parent=0 // pred_check
    _
  $region51: #{model_forward.1} parent=0 // pred_check_branch
    %45 = sbr.rel (0) target = $region53
  $region52: #{model_forward.1} parent=0 // pred_region
    _
  $region53: #{model_forward.1} parent=0 // pred_fallthru
    _
  // Predicated region
  $region54: #{model_forward.1} parent=0 // pred_check
    _
  $region55: #{model_forward.1} parent=0 // pred_check_branch
    %47 = sbr.rel (0) target = $region57
  $region56: #{model_forward.1} parent=0 // pred_region
    _
  $region57: #{model_forward.1} parent=0 // pred_fallthru
    _
  // Predicated region
  $region58: #{model_forward.1} parent=0 // pred_check
    _
  $region59: #{model_forward.1} parent=0 // pred_check_branch
    %49 = sbr.rel (0) target = $region61
  $region60: #{model_forward.1} parent=0 // pred_region
    _
  $region61: #{model_forward.1} parent=0 // pred_fallthru
    _
  %v51 = vld [vmem:[%s9] sm:$0xf]
  %v52 = vld [vmem:[%s3] sm:$0xf]
  %v53 = vld [vmem:[%s4] sm:$0xf]
  %v54 = vld [vmem:[%s4 + $0x4] sm:$0xf]
  %v55 = vld [vmem:[%s5] sm:$0xff]
  %v57 = vunpack.c.l.b16 %v55
  %v58 = vunpack.c.h.b16 %v55
  %v59 = vpack.c.b16 %v57, %v57
  %v60 = vpack.c.b16 %v58, %v58
  %vm61 = vcmask 64512
  %v63 = vsel %vm61, %v52, 0
  %vm65 = vcmask 1043456
  %v67 = vsel %vm65, %v59, 0
  %v70 = vsel %vm65, %v60, 0
  %72 = vmatprep.subr.bf16.mxu0 %v70
  %73 = vmatpush1.bf16.msra.mxu0 %v67
  %74 = vmatprep.subr.bf16.mxu0 0
  %75 = vmatpush1.bf16.msra.mxu0 0
  %76 = vmatprep.subr.bf16.mxu0 0
  %77 = vmatpush1.bf16.msra.mxu0 0
  %78 = vmatprep.subr.bf16.mxu0 0
  %79 = vmatpush1.bf16.msra.mxu0 0
  %80 = vmatprep.subr.bf16.mxu0 0
  %81 = vmatpush1.bf16.msra.mxu0 0
  %82 = vmatprep.subr.bf16.mxu0 0
  %83 = vmatpush1.bf16.msra.mxu0 0
  %84 = vmatprep.subr.bf16.mxu0 0
  %85 = vmatpush1.bf16.msra.mxu0 0
  %86 = vmatprep.subr.bf16.mxu0 0
  %87 = vmatpush1.bf16.msra.mxu0 0
  %88 = vmatprep.subr.bf16.mxu0 0
  %89 = vmatpush1.bf16.msra.mxu0 0
  %90 = vmatprep.subr.bf16.mxu0 0
  %91 = vmatpush1.bf16.msra.mxu0 0
  %92 = vmatprep.subr.bf16.mxu0 0
  %93 = vmatpush1.bf16.msra.mxu0 0
  %94 = vmatprep.subr.bf16.mxu0 0
  %95 = vmatpush1.bf16.msra.mxu0 0
  %96 = vmatprep.subr.bf16.mxu0 0
  %97 = vmatpush1.bf16.msra.mxu0 0
  %98 = vmatprep.subr.bf16.mxu0 0
  %99 = vmatpush1.bf16.msra.mxu0 0
  %100 = vmatprep.subr.bf16.mxu0 0
  %101 = vmatpush1.bf16.msra.mxu0 0
  %102 = vmatprep.subr.bf16.mxu0 0
  %103 = vmatpush1.bf16.msra.mxu0 0
  %104 = vmatprep.mubr.bf16.mxu0 0
  %105 = vmatmul.mubr.bf16.gmra.mrb[0].mxu0 %v63
  %v106 = vpop.f32.mrb[0].mxu0
  %v107 = vadd.f32 0.0, %v106
  %v108 = vpop.f32.mrb[0].mxu0
  %v109 = vadd.f32 0.0, %v108
  %v110 = vpop.f32.mrb[0].mxu0
  %v111 = vpop.f32.mrb[0].mxu0
  %112 = vdwg.mxu0
  %v113 = vld [vmem:[%s6] sm:$0xf]
  %v116 = vunpack.c.l.b16 %v53
  %v117 = vunpack.c.l.b16 %v54
  %v118 = vpack.c.b16 %v117, %v116
  %v120 = vsel %vm61, %v118, 0
  %v123 = vsel %vm65, %v113, 0
  %125 = vmatprep.subr.bf16.mxu0 0
  %126 = vmatpush1.bf16.msra.mxu0 %v123
  %127 = vmatprep.subr.bf16.mxu0 0
  %128 = vmatpush1.bf16.msra.mxu0 0
  %129 = vmatprep.subr.bf16.mxu0 0
  %130 = vmatpush1.bf16.msra.mxu0 0
  %131 = vmatprep.subr.bf16.mxu0 0
  %132 = vmatpush1.bf16.msra.mxu0 0
  %133 = vmatprep.subr.bf16.mxu0 0
  %134 = vmatpush1.bf16.msra.mxu0 0
  %135 = vmatprep.subr.bf16.mxu0 0
  %136 = vmatpush1.bf16.msra.mxu0 0
  %137 = vmatprep.subr.bf16.mxu0 0
  %138 = vmatpush1.bf16.msra.mxu0 0
  %139 = vmatprep.subr.bf16.mxu0 0
  %140 = vmatpush1.bf16.msra.mxu0 0
  %141 = vmatprep.subr.bf16.mxu0 0
  %142 = vmatpush1.bf16.msra.mxu0 0
  %143 = vmatprep.subr.bf16.mxu0 0
  %144 = vmatpush1.bf16.msra.mxu0 0
  %145 = vmatprep.subr.bf16.mxu0 0
  %146 = vmatpush1.bf16.msra.mxu0 0
  %147 = vmatprep.subr.bf16.mxu0 0
  %148 = vmatpush1.bf16.msra.mxu0 0
  %149 = vmatprep.subr.bf16.mxu0 0
  %150 = vmatpush1.bf16.msra.mxu0 0
  %151 = vmatprep.subr.bf16.mxu0 0
  %152 = vmatpush1.bf16.msra.mxu0 0
  %153 = vmatprep.subr.bf16.mxu0 0
  %154 = vmatpush1.bf16.msra.mxu0 0
  %155 = vmatprep.subr.bf16.mxu0 0
  %156 = vmatpush1.bf16.msra.mxu0 0
  %157 = vmatprep.mubr.bf16.mxu0 0
  %158 = vmatmul.mubr.bf16.gmra.mrb[0].mxu0 %v120
  %v159 = vpop.f32.mrb[0].mxu0
  %v160 = vadd.f32 0.0, %v159
  %v161 = vpop.f32.mrb[0].mxu0
  %v162 = vpop.f32.mrb[0].mxu0
  %v163 = vadd.f32 0.0, %v162
  %v164 = vpop.f32.mrb[0].mxu0
  %165 = vdwg.mxu0
  %v166 = vld [vmem:[%s0] sm:$0xf]
  %v167 = vld [vmem:[%s0 + $0x4] sm:$0xf]
  %v168 = vpack.c.bf16 %v107, %v107
  %v169 = vld [vmem:[%s1] sm:$0xf]
  %v170 = vpack.c.bf16 %v163, %v160
  %v171 = vld [vmem:[%s2] sm:$0xf]
  %v172 = vpack.c.bf16 %v109, %v109
  %v174 = vsel %vm61, %v171, 0
  %v177 = vsel %vm65, %v172, 0
  %179 = vmatprep.subr.bf16.mxu0 0
  %180 = vmatpush1.bf16.msra.mxu0 %v177
  %181 = vmatprep.subr.bf16.mxu0 0
  %182 = vmatpush1.bf16.msra.mxu0 0
  %183 = vmatprep.subr.bf16.mxu0 0
  %184 = vmatpush1.bf16.msra.mxu0 0
  %185 = vmatprep.subr.bf16.mxu0 0
  %186 = vmatpush1.bf16.msra.mxu0 0
  %187 = vmatprep.subr.bf16.mxu0 0
  %188 = vmatpush1.bf16.msra.mxu0 0
  %189 = vmatprep.subr.bf16.mxu0 0
  %190 = vmatpush1.bf16.msra.mxu0 0
  %191 = vmatprep.subr.bf16.mxu0 0
  %192 = vmatpush1.bf16.msra.mxu0 0
  %193 = vmatprep.subr.bf16.mxu0 0
  %194 = vmatpush1.bf16.msra.mxu0 0
  %195 = vmatprep.subr.bf16.mxu0 0
  %196 = vmatpush1.bf16.msra.mxu0 0
  %197 = vmatprep.subr.bf16.mxu0 0
  %198 = vmatpush1.bf16.msra.mxu0 0
  %199 = vmatprep.subr.bf16.mxu0 0
  %200 = vmatpush1.bf16.msra.mxu0 0
  %201 = vmatprep.subr.bf16.mxu0 0
  %202 = vmatpush1.bf16.msra.mxu0 0
  %203 = vmatprep.subr.bf16.mxu0 0
  %204 = vmatpush1.bf16.msra.mxu0 0
  %205 = vmatprep.subr.bf16.mxu0 0
  %206 = vmatpush1.bf16.msra.mxu0 0
  %207 = vmatprep.subr.bf16.mxu0 0
  %208 = vmatpush1.bf16.msra.mxu0 0
  %209 = vmatprep.subr.bf16.mxu0 0
  %210 = vmatpush1.bf16.msra.mxu0 0
  %211 = vmatprep.mubr.bf16.mxu0 0
  %212 = vmatmul.mubr.bf16.gmra.mrb[0].mxu0 %v174
  %v213 = vpop.f32.mrb[0].mxu0
  %v214 = vadd.f32 0.0, %v213
  %v215 = vpop.f32.mrb[0].mxu0
  %v216 = vpop.f32.mrb[0].mxu0
  %v217 = vpop.f32.mrb[0].mxu0
  %218 = vdwg.mxu0
  %vm219 = vcmask 130048
  %v221 = vsel %vm219, %v169, 0
  %223 = vmatprep.subr.bf16.mxu0 0
  %224 = vmatpush1.bf16.msra.mxu0 %v170
  %225 = vmatprep.subr.bf16.mxu0 0
  %226 = vmatpush1.bf16.msra.mxu0 0
  %227 = vmatprep.subr.bf16.mxu0 0
  %228 = vmatpush1.bf16.msra.mxu0 0
  %229 = vmatprep.subr.bf16.mxu0 0
  %230 = vmatpush1.bf16.msra.mxu0 0
  %231 = vmatprep.subr.bf16.mxu0 0
  %232 = vmatpush1.bf16.msra.mxu0 0
  %233 = vmatprep.subr.bf16.mxu0 0
  %234 = vmatpush1.bf16.msra.mxu0 0
  %235 = vmatprep.subr.bf16.mxu0 0
  %236 = vmatpush1.bf16.msra.mxu0 0
  %237 = vmatprep.subr.bf16.mxu0 0
  %238 = vmatpush1.bf16.msra.mxu0 0
  %239 = vmatprep.subr.bf16.mxu0 0
  %240 = vmatpush1.bf16.msra.mxu0 0
  %241 = vmatprep.subr.bf16.mxu0 0
  %242 = vmatpush1.bf16.msra.mxu0 0
  %243 = vmatprep.subr.bf16.mxu0 0
  %244 = vmatpush1.bf16.msra.mxu0 0
  %245 = vmatprep.subr.bf16.mxu0 0
  %246 = vmatpush1.bf16.msra.mxu0 0
  %247 = vmatprep.subr.bf16.mxu0 0
  %248 = vmatpush1.bf16.msra.mxu0 0
  %249 = vmatprep.subr.bf16.mxu0 0
  %250 = vmatpush1.bf16.msra.mxu0 0
  %251 = vmatprep.subr.bf16.mxu0 0
  %252 = vmatpush1.bf16.msra.mxu0 0
  %253 = vmatprep.subr.bf16.mxu0 0
  %254 = vmatpush1.bf16.msra.mxu0 0
  %255 = vmatprep.mubr.bf16.mxu0 0
  %256 = vmatmul.mubr.bf16.gmra.mrb[0].mxu0 %v221
  %v257 = vpop.f32.mrb[0].mxu0
  %v258 = vadd.f32 %v214, %v257
  %v259 = vpop.f32.mrb[0].mxu0
  %v260 = vpop.f32.mrb[0].mxu0
  %v261 = vpop.f32.mrb[0].mxu0
  %262 = vdwg.mxu0
  %v263 = vlaneseq
  %v264 = vshrl.u32 %v263, 7
  %v265 = vsub.s32 0, %v264
  %v266 = vrot.slane %v51, %v265
  %v269 = vunpack.c.l.b16 %v166
  %v270 = vunpack.c.l.b16 %v167
  %v271 = vpack.c.b16 %v270, %v269
  %v273 = vsel %vm61, %v271, 0
  %v276 = vsel %vm65, %v168, 0
  %278 = vmatprep.subr.bf16.mxu0 0
  %279 = vmatpush1.bf16.msra.mxu0 %v276
  %280 = vmatprep.subr.bf16.mxu0 0
  %281 = vmatpush1.bf16.msra.mxu0 0
  %282 = vmatprep.subr.bf16.mxu0 0
  %283 = vmatpush1.bf16.msra.mxu0 0
  %284 = vmatprep.subr.bf16.mxu0 0
  %285 = vmatpush1.bf16.msra.mxu0 0
  %286 = vmatprep.subr.bf16.mxu0 0
  %287 = vmatpush1.bf16.msra.mxu0 0
  %288 = vmatprep.subr.bf16.mxu0 0
  %289 = vmatpush1.bf16.msra.mxu0 0
  %290 = vmatprep.subr.bf16.mxu0 0
  %291 = vmatpush1.bf16.msra.mxu0 0
  %292 = vmatprep.subr.bf16.mxu0 0
  %293 = vmatpush1.bf16.msra.mxu0 0
  %294 = vmatprep.subr.bf16.mxu0 0
  %295 = vmatpush1.bf16.msra.mxu0 0
  %296 = vmatprep.subr.bf16.mxu0 0
  %297 = vmatpush1.bf16.msra.mxu0 0
  %298 = vmatprep.subr.bf16.mxu0 0
  %299 = vmatpush1.bf16.msra.mxu0 0
  %300 = vmatprep.subr.bf16.mxu0 0
  %301 = vmatpush1.bf16.msra.mxu0 0
  %302 = vmatprep.subr.bf16.mxu0 0
  %303 = vmatpush1.bf16.msra.mxu0 0
  %304 = vmatprep.subr.bf16.mxu0 0
  %305 = vmatpush1.bf16.msra.mxu0 0
  %306 = vmatprep.subr.bf16.mxu0 0
  %307 = vmatpush1.bf16.msra.mxu0 0
  %308 = vmatprep.subr.bf16.mxu0 0
  %309 = vmatpush1.bf16.msra.mxu0 0
  %310 = vmatprep.mubr.bf16.mxu0 0
  %311 = vmatmul.mubr.bf16.gmra.mrb[0].mxu0 %v273
  %v312 = vpop.f32.mrb[0].mxu0
  %v313 = vadd.f32 %v266, %v312
  %v314 = vpop.f32.mrb[0].mxu0
  %v315 = vpop.f32.mrb[0].mxu0
  %v316 = vadd.f32 %v266, %v315
  %v317 = vpop.f32.mrb[0].mxu0
  %318 = vdwg.mxu0
  %v319 = vmax.f32 %v313, 0.0
  %v320 = vmax.f32 %v316, 0.0
  %v321 = vlaneseq
  %v322 = vshrl.u32 %v321, 7
  %v323 = vsub.s32 1, %v322
  %v324 = vrot.slane %v51, %v323
  %v325 = vadd.f32 %v258, %v324
  %v326 = vmax.f32 %v325, 0.0
  %v327 = vpack.c.bf16 %v320, %v319
  %v328 = vpack.c.bf16 %v326, %v326
  %v329 = vld [vmem:[%s7] sm:$0xff]
  %v330 = vld [vmem:[%s7 + $0x8] sm:$0xff]
  %v331 = vld [vmem:[%s7 + $0x10] sm:$0xff]
  %v332 = vld [vmem:[%s7 + $0x18] sm:$0xff]
  %v333 = vld [vmem:[%s7 + $0x20] sm:$0xff]
  %v334 = vld [vmem:[%s7 + $0x28] sm:$0xff]
  %v335 = vld [vmem:[%s7 + $0x30] sm:$0xff]
  %v336 = vld [vmem:[%s7 + $0x38] sm:$0xff]
  %v337 = vld [vmem:[%s7 + $0x40] sm:$0xff]
  %v338 = vld [vmem:[%s7 + $0x48] sm:$0xff]
  %v339 = vld [vmem:[%s7 + $0x50] sm:$0xff]
  %v340 = vld [vmem:[%s7 + $0x58] sm:$0xff]
  %v341 = vld [vmem:[%s7 + $0x60] sm:$0xff]
  %v342 = vld [vmem:[%s7 + $0x68] sm:$0xff]
  %v343 = vld [vmem:[%s7 + $0x70] sm:$0xff]
  %v344 = vld [vmem:[%s7 + $0x78] sm:$0xff]
  %v361 = vunpack.c.l.b16 %v329
  %v362 = vunpack.c.h.b16 %v329
  %v363 = vunpack.c.l.b16 %v330
  %v364 = vunpack.c.h.b16 %v330
  %v365 = vunpack.c.l.b16 %v331
  %v366 = vunpack.c.h.b16 %v331
  %v367 = vunpack.c.l.b16 %v332
  %v368 = vunpack.c.h.b16 %v332
  %v369 = vunpack.c.l.b16 %v333
  %v370 = vunpack.c.h.b16 %v333
  %v371 = vunpack.c.l.b16 %v334
  %v372 = vunpack.c.h.b16 %v334
  %v373 = vunpack.c.l.b16 %v335
  %v374 = vunpack.c.h.b16 %v335
  %v375 = vunpack.c.l.b16 %v336
  %v376 = vunpack.c.h.b16 %v336
  %v377 = vunpack.c.l.b16 %v337
  %v378 = vunpack.c.h.b16 %v337
  %v379 = vunpack.c.l.b16 %v338
  %v380 = vunpack.c.h.b16 %v338
  %v381 = vunpack.c.l.b16 %v339
  %v382 = vunpack.c.h.b16 %v339
  %v383 = vunpack.c.l.b16 %v340
  %v384 = vunpack.c.h.b16 %v340
  %v385 = vunpack.c.l.b16 %v341
  %v386 = vunpack.c.h.b16 %v341
  %v387 = vunpack.c.l.b16 %v342
  %v388 = vunpack.c.h.b16 %v342
  %v389 = vunpack.c.l.b16 %v343
  %v390 = vunpack.c.h.b16 %v343
  %v391 = vunpack.c.l.b16 %v344
  %v392 = vunpack.c.h.b16 %v344
  %v393 = vpack.c.b16 %v363, %v361
  %v394 = vpack.c.b16 %v364, %v362
  %v395 = vpack.c.b16 %v367, %v365
  %v396 = vpack.c.b16 %v368, %v366
  %v397 = vpack.c.b16 %v371, %v369
  %v398 = vpack.c.b16 %v372, %v370
  %v399 = vpack.c.b16 %v375, %v373
  %v400 = vpack.c.b16 %v376, %v374
  %v401 = vpack.c.b16 %v379, %v377
  %v402 = vpack.c.b16 %v380, %v378
  %v403 = vpack.c.b16 %v383, %v381
  %v404 = vpack.c.b16 %v384, %v382
  %v405 = vpack.c.b16 %v387, %v385
  %v406 = vpack.c.b16 %v388, %v386
  %v407 = vpack.c.b16 %v391, %v389
  %v408 = vpack.c.b16 %v392, %v390
  %425 = vmatprep.subr.bf16.mxu0 %v394
  %426 = vmatpush1.bf16.msra.mxu0 %v393
  %427 = vmatprep.subr.bf16.mxu0 %v396
  %428 = vmatpush1.bf16.msra.mxu0 %v395
  %429 = vmatprep.subr.bf16.mxu0 %v398
  %430 = vmatpush1.bf16.msra.mxu0 %v397
  %431 = vmatprep.subr.bf16.mxu0 %v400
  %432 = vmatpush1.bf16.msra.mxu0 %v399
  %433 = vmatprep.subr.bf16.mxu0 %v402
  %434 = vmatpush1.bf16.msra.mxu0 %v401
  %435 = vmatprep.subr.bf16.mxu0 %v404
  %436 = vmatpush1.bf16.msra.mxu0 %v403
  %437 = vmatprep.subr.bf16.mxu0 %v406
  %438 = vmatpush1.bf16.msra.mxu0 %v405
  %439 = vmatprep.subr.bf16.mxu0 %v408
  %440 = vmatpush1.bf16.msra.mxu0 %v407
  %441 = vmatprep.subr.bf16.mxu0 0
  %442 = vmatpush1.bf16.msra.mxu0 0
  %443 = vmatprep.subr.bf16.mxu0 0
  %444 = vmatpush1.bf16.msra.mxu0 0
  %445 = vmatprep.subr.bf16.mxu0 0
  %446 = vmatpush1.bf16.msra.mxu0 0
  %447 = vmatprep.subr.bf16.mxu0 0
  %448 = vmatpush1.bf16.msra.mxu0 0
  %449 = vmatprep.subr.bf16.mxu0 0
  %450 = vmatpush1.bf16.msra.mxu0 0
  %451 = vmatprep.subr.bf16.mxu0 0
  %452 = vmatpush1.bf16.msra.mxu0 0
  %453 = vmatprep.subr.bf16.mxu0 0
  %454 = vmatpush1.bf16.msra.mxu0 0
  %455 = vmatprep.subr.bf16.mxu0 0
  %456 = vmatpush1.bf16.msra.mxu0 0
  %457 = vmatprep.mubr.bf16.mxu0 0
  %458 = vmatmul.mubr.bf16.gmra.mrb[0].mxu0 %v328
  %v459 = vpop.f32.mrb[0].mxu0
  %v460 = vadd.f32 0.0, %v459
  %v461 = vpop.f32.mrb[0].mxu0
  %v462 = vadd.f32 0.0, %v461
  %v463 = vpop.f32.mrb[0].mxu0
  %v464 = vpop.f32.mrb[0].mxu0
  %465 = vdwg.mxu0
  %v466 = vld [vmem:[%s8] sm:$0xf]
  %v467 = vld [vmem:[%s8 + $0x4] sm:$0xf]
  %v468 = vld [vmem:[%s8 + $0x8] sm:$0xf]
  %v469 = vld [vmem:[%s8 + $0xc] sm:$0xf]
  %v470 = vld [vmem:[%s8 + $0x10] sm:$0xf]
  %v471 = vld [vmem:[%s8 + $0x14] sm:$0xf]
  %v472 = vld [vmem:[%s8 + $0x18] sm:$0xf]
  %v473 = vld [vmem:[%s8 + $0x1c] sm:$0xf]
  %v474 = vld [vmem:[%s8 + $0x20] sm:$0xf]
  %v475 = vld [vmem:[%s8 + $0x24] sm:$0xf]
  %v476 = vld [vmem:[%s8 + $0x28] sm:$0xf]
  %v477 = vld [vmem:[%s8 + $0x2c] sm:$0xf]
  %v478 = vld [vmem:[%s8 + $0x30] sm:$0xf]
  %v479 = vld [vmem:[%s8 + $0x34] sm:$0xf]
  %v480 = vld [vmem:[%s8 + $0x38] sm:$0xf]
  %v481 = vld [vmem:[%s8 + $0x3c] sm:$0xf]
  %v498 = vunpack.c.l.b16 %v466
  %v499 = vunpack.c.l.b16 %v467
  %v500 = vunpack.c.l.b16 %v468
  %v501 = vunpack.c.l.b16 %v469
  %v502 = vunpack.c.l.b16 %v470
  %v503 = vunpack.c.l.b16 %v471
  %v504 = vunpack.c.l.b16 %v472
  %v505 = vunpack.c.l.b16 %v473
  %v506 = vunpack.c.l.b16 %v474
  %v507 = vunpack.c.l.b16 %v475
  %v508 = vunpack.c.l.b16 %v476
  %v509 = vunpack.c.l.b16 %v477
  %v510 = vunpack.c.l.b16 %v478
  %v511 = vunpack.c.l.b16 %v479
  %v512 = vunpack.c.l.b16 %v480
  %v513 = vunpack.c.l.b16 %v481
  %v514 = vpack.c.b16 %v499, %v498
  %v515 = vpack.c.b16 %v501, %v500
  %v516 = vpack.c.b16 %v503, %v502
  %v517 = vpack.c.b16 %v505, %v504
  %v518 = vpack.c.b16 %v507, %v506
  %v519 = vpack.c.b16 %v509, %v508
  %v520 = vpack.c.b16 %v511, %v510
  %v521 = vpack.c.b16 %v513, %v512
  %530 = vmatprep.subr.bf16.mxu0 0
  %531 = vmatpush1.bf16.msra.mxu0 %v514
  %532 = vmatprep.subr.bf16.mxu0 0
  %533 = vmatpush1.bf16.msra.mxu0 %v515
  %534 = vmatprep.subr.bf16.mxu0 0
  %535 = vmatpush1.bf16.msra.mxu0 %v516
  %536 = vmatprep.subr.bf16.mxu0 0
  %537 = vmatpush1.bf16.msra.mxu0 %v517
  %538 = vmatprep.subr.bf16.mxu0 0
  %539 = vmatpush1.bf16.msra.mxu0 %v518
  %540 = vmatprep.subr.bf16.mxu0 0
  %541 = vmatpush1.bf16.msra.mxu0 %v519
  %542 = vmatprep.subr.bf16.mxu0 0
  %543 = vmatpush1.bf16.msra.mxu0 %v520
  %544 = vmatprep.subr.bf16.mxu0 0
  %545 = vmatpush1.bf16.msra.mxu0 %v521
  %546 = vmatprep.subr.bf16.mxu0 0
  %547 = vmatpush1.bf16.msra.mxu0 0
  %548 = vmatprep.subr.bf16.mxu0 0
  %549 = vmatpush1.bf16.msra.mxu0 0
  %550 = vmatprep.subr.bf16.mxu0 0
  %551 = vmatpush1.bf16.msra.mxu0 0
  %552 = vmatprep.subr.bf16.mxu0 0
  %553 = vmatpush1.bf16.msra.mxu0 0
  %554 = vmatprep.subr.bf16.mxu0 0
  %555 = vmatpush1.bf16.msra.mxu0 0
  %556 = vmatprep.subr.bf16.mxu0 0
  %557 = vmatpush1.bf16.msra.mxu0 0
  %558 = vmatprep.subr.bf16.mxu0 0
  %559 = vmatpush1.bf16.msra.mxu0 0
  %560 = vmatprep.subr.bf16.mxu0 0
  %561 = vmatpush1.bf16.msra.mxu0 0
  %562 = vmatprep.mubr.bf16.mxu0 0
  %563 = vmatmul.mubr.bf16.gmra.mrb[0].mxu0 %v327
  %v564 = vpop.f32.mrb[0].mxu0
  %v565 = vadd.f32 0.0, %v564
  %v566 = vpop.f32.mrb[0].mxu0
  %v567 = vpop.f32.mrb[0].mxu0
  %v568 = vadd.f32 0.0, %v567
  %v569 = vpop.f32.mrb[0].mxu0
  %570 = vdwg.mxu0
  %v571 = vpack.c.bf16 %v460, %v460
  %v572 = vpack.c.bf16 %v568, %v565
  %v573 = vpack.c.bf16 %v462, %v462
  %v575 = vsel %vm65, %v573, 0
  %577 = vmatprep.subr.bf16.mxu0 0
  %578 = vmatpush1.bf16.msra.mxu0 %v575
  %579 = vmatprep.subr.bf16.mxu0 0
  %580 = vmatpush1.bf16.msra.mxu0 0
  %581 = vmatprep.subr.bf16.mxu0 0
  %582 = vmatpush1.bf16.msra.mxu0 0
  %583 = vmatprep.subr.bf16.mxu0 0
  %584 = vmatpush1.bf16.msra.mxu0 0
  %585 = vmatprep.subr.bf16.mxu0 0
  %586 = vmatpush1.bf16.msra.mxu0 0
  %587 = vmatprep.subr.bf16.mxu0 0
  %588 = vmatpush1.bf16.msra.mxu0 0
  %589 = vmatprep.subr.bf16.mxu0 0
  %590 = vmatpush1.bf16.msra.mxu0 0
  %591 = vmatprep.subr.bf16.mxu0 0
  %592 = vmatpush1.bf16.msra.mxu0 0
  %593 = vmatprep.subr.bf16.mxu0 0
  %594 = vmatpush1.bf16.msra.mxu0 0
  %595 = vmatprep.subr.bf16.mxu0 0
  %596 = vmatpush1.bf16.msra.mxu0 0
  %597 = vmatprep.subr.bf16.mxu0 0
  %598 = vmatpush1.bf16.msra.mxu0 0
  %599 = vmatprep.subr.bf16.mxu0 0
  %600 = vmatpush1.bf16.msra.mxu0 0
  %601 = vmatprep.subr.bf16.mxu0 0
  %602 = vmatpush1.bf16.msra.mxu0 0
  %603 = vmatprep.subr.bf16.mxu0 0
  %604 = vmatpush1.bf16.msra.mxu0 0
  %605 = vmatprep.subr.bf16.mxu0 0
  %606 = vmatpush1.bf16.msra.mxu0 0
  %607 = vmatprep.subr.bf16.mxu0 0
  %608 = vmatpush1.bf16.msra.mxu0 0
  %609 = vmatprep.mubr.bf16.mxu0 0
  %610 = vmatmul.mubr.bf16.gmra.mrb[0].mxu0 %v174
  %v611 = vpop.f32.mrb[0].mxu0
  %v612 = vadd.f32 0.0, %v611
  %v613 = vpop.f32.mrb[0].mxu0
  %v614 = vpop.f32.mrb[0].mxu0
  %v615 = vpop.f32.mrb[0].mxu0
  %616 = vdwg.mxu0
  %617 = vmatprep.subr.bf16.mxu0 0
  %618 = vmatpush1.bf16.msra.mxu0 %v572
  %619 = vmatprep.subr.bf16.mxu0 0
  %620 = vmatpush1.bf16.msra.mxu0 0
  %621 = vmatprep.subr.bf16.mxu0 0
  %622 = vmatpush1.bf16.msra.mxu0 0
  %623 = vmatprep.subr.bf16.mxu0 0
  %624 = vmatpush1.bf16.msra.mxu0 0
  %625 = vmatprep.subr.bf16.mxu0 0
  %626 = vmatpush1.bf16.msra.mxu0 0
  %627 = vmatprep.subr.bf16.mxu0 0
  %628 = vmatpush1.bf16.msra.mxu0 0
  %629 = vmatprep.subr.bf16.mxu0 0
  %630 = vmatpush1.bf16.msra.mxu0 0
  %631 = vmatprep.subr.bf16.mxu0 0
  %632 = vmatpush1.bf16.msra.mxu0 0
  %633 = vmatprep.subr.bf16.mxu0 0
  %634 = vmatpush1.bf16.msra.mxu0 0
  %635 = vmatprep.subr.bf16.mxu0 0
  %636 = vmatpush1.bf16.msra.mxu0 0
  %637 = vmatprep.subr.bf16.mxu0 0
  %638 = vmatpush1.bf16.msra.mxu0 0
  %639 = vmatprep.subr.bf16.mxu0 0
  %640 = vmatpush1.bf16.msra.mxu0 0
  %641 = vmatprep.subr.bf16.mxu0 0
  %642 = vmatpush1.bf16.msra.mxu0 0
  %643 = vmatprep.subr.bf16.mxu0 0
  %644 = vmatpush1.bf16.msra.mxu0 0
  %645 = vmatprep.subr.bf16.mxu0 0
  %646 = vmatpush1.bf16.msra.mxu0 0
  %647 = vmatprep.subr.bf16.mxu0 0
  %648 = vmatpush1.bf16.msra.mxu0 0
  %649 = vmatprep.mubr.bf16.mxu0 0
  %650 = vmatmul.mubr.bf16.gmra.mrb[0].mxu0 %v221
  %v651 = vpop.f32.mrb[0].mxu0
  %v652 = vadd.f32 %v612, %v651
  %v653 = vpop.f32.mrb[0].mxu0
  %v654 = vpop.f32.mrb[0].mxu0
  %v655 = vpop.f32.mrb[0].mxu0
  %656 = vdwg.mxu0
  %v657 = vlaneseq
  %v658 = vshrl.u32 %v657, 7
  %v659 = vsub.s32 2, %v658
  %v660 = vrot.slane %v51, %v659
  %v662 = vsel %vm65, %v571, 0
  %664 = vmatprep.subr.bf16.mxu0 0
  %665 = vmatpush1.bf16.msra.mxu0 %v662
  %666 = vmatprep.subr.bf16.mxu0 0
  %667 = vmatpush1.bf16.msra.mxu0 0
  %668 = vmatprep.subr.bf16.mxu0 0
  %669 = vmatpush1.bf16.msra.mxu0 0
  %670 = vmatprep.subr.bf16.mxu0 0
  %671 = vmatpush1.bf16.msra.mxu0 0
  %672 = vmatprep.subr.bf16.mxu0 0
  %673 = vmatpush1.bf16.msra.mxu0 0
  %674 = vmatprep.subr.bf16.mxu0 0
  %675 = vmatpush1.bf16.msra.mxu0 0
  %676 = vmatprep.subr.bf16.mxu0 0
  %677 = vmatpush1.bf16.msra.mxu0 0
  %678 = vmatprep.subr.bf16.mxu0 0
  %679 = vmatpush1.bf16.msra.mxu0 0
  %680 = vmatprep.subr.bf16.mxu0 0
  %681 = vmatpush1.bf16.msra.mxu0 0
  %682 = vmatprep.subr.bf16.mxu0 0
  %683 = vmatpush1.bf16.msra.mxu0 0
  %684 = vmatprep.subr.bf16.mxu0 0
  %685 = vmatpush1.bf16.msra.mxu0 0
  %686 = vmatprep.subr.bf16.mxu0 0
  %687 = vmatpush1.bf16.msra.mxu0 0
  %688 = vmatprep.subr.bf16.mxu0 0
  %689 = vmatpush1.bf16.msra.mxu0 0
  %690 = vmatprep.subr.bf16.mxu0 0
  %691 = vmatpush1.bf16.msra.mxu0 0
  %692 = vmatprep.subr.bf16.mxu0 0
  %693 = vmatpush1.bf16.msra.mxu0 0
  %694 = vmatprep.subr.bf16.mxu0 0
  %695 = vmatpush1.bf16.msra.mxu0 0
  %696 = vmatprep.mubr.bf16.mxu0 0
  %697 = vmatmul.mubr.bf16.gmra.mrb[0].mxu0 %v273
  %v698 = vpop.f32.mrb[0].mxu0
  %v699 = vadd.f32 %v660, %v698
  %v700 = vpop.f32.mrb[0].mxu0
  %v701 = vpop.f32.mrb[0].mxu0
  %v702 = vadd.f32 %v660, %v701
  %v703 = vpop.f32.mrb[0].mxu0
  %704 = vdwg.mxu0
  %v705 = vlaneseq
  %v706 = vshrl.u32 %v705, 7
  %v707 = vsub.s32 3, %v706
  %v708 = vrot.slane %v51, %v707
  %v709 = vadd.f32 %v652, %v708
  %v710 = vld [vmem:[%s10] sm:$0xf]
  %v711 = vld [vmem:[%s10 + $0x4] sm:$0xf]
  %v712 = vld [vmem:[%s10 + $0x8] sm:$0xf]
  %v713 = vpack.c.bf16 %v709, %v709
  %v717 = vunpack.c.l.b16 %v710
  %v718 = vunpack.c.l.b16 %v711
  %v719 = vunpack.c.l.b16 %v712
  %v720 = vpack.c.b16 %v718, %v717
  %v721 = vpack.c.b16 %v719, %v719
  %v723 = vsel %vm61, %v720, 0
  %v726 = vsel %vm61, %v721, 0
  %v729 = vsel %vm65, %v713, 0
  %731 = vmatprep.subr.bf16.mxu0 0
  %732 = vmatpush1.bf16.msra.mxu0 %v729
  %733 = vmatprep.subr.bf16.mxu0 0
  %734 = vmatpush1.bf16.msra.mxu0 0
  %735 = vmatprep.subr.bf16.mxu0 0
  %736 = vmatpush1.bf16.msra.mxu0 0
  %737 = vmatprep.subr.bf16.mxu0 0
  %738 = vmatpush1.bf16.msra.mxu0 0
  %739 = vmatprep.subr.bf16.mxu0 0
  %740 = vmatpush1.bf16.msra.mxu0 0
  %741 = vmatprep.subr.bf16.mxu0 0
  %742 = vmatpush1.bf16.msra.mxu0 0
  %743 = vmatprep.subr.bf16.mxu0 0
  %744 = vmatpush1.bf16.msra.mxu0 0
  %745 = vmatprep.subr.bf16.mxu0 0
  %746 = vmatpush1.bf16.msra.mxu0 0
  %747 = vmatprep.subr.bf16.mxu0 0
  %748 = vmatpush1.bf16.msra.mxu0 0
  %749 = vmatprep.subr.bf16.mxu0 0
  %750 = vmatpush1.bf16.msra.mxu0 0
  %751 = vmatprep.subr.bf16.mxu0 0
  %752 = vmatpush1.bf16.msra.mxu0 0
  %753 = vmatprep.subr.bf16.mxu0 0
  %754 = vmatpush1.bf16.msra.mxu0 0
  %755 = vmatprep.subr.bf16.mxu0 0
  %756 = vmatpush1.bf16.msra.mxu0 0
  %757 = vmatprep.subr.bf16.mxu0 0
  %758 = vmatpush1.bf16.msra.mxu0 0
  %759 = vmatprep.subr.bf16.mxu0 0
  %760 = vmatpush1.bf16.msra.mxu0 0
  %761 = vmatprep.subr.bf16.mxu0 0
  %762 = vmatpush1.bf16.msra.mxu0 0
  %763 = vmatprep.mubr.bf16.mxu0 0
  %764 = vmatmul.mubr.bf16.gmra.mrb[0].mxu0 %v723
  %v765 = vpop.f32.mrb[0].mxu0
  %v766 = vadd.f32 0.0, %v765
  %v767 = vpop.f32.mrb[0].mxu0
  %v768 = vpop.f32.mrb[0].mxu0
  %v769 = vadd.f32 0.0, %v768
  %v770 = vpop.f32.mrb[0].mxu0
  %771 = vmatprep.mubr.bf16.mxu0 0
  %772 = vmatmul.mubr.bf16.gmra.mrb[0].mxu0 %v726
  %v773 = vpop.f32.mrb[0].mxu0
  %v774 = vadd.f32 0.0, %v773
  %v775 = vpop.f32.mrb[0].mxu0
  %v776 = vpop.f32.mrb[0].mxu0
  %v777 = vpop.f32.mrb[0].mxu0
  %778 = vdwg.mxu0
  %v779 = vld [vmem:[%s11] sm:$0xf]
  %v780 = vld [vmem:[%s11 + $0x4] sm:$0xf]
  %v781 = vld [vmem:[%s11 + $0x8] sm:$0xf]
  %v782 = vpack.c.bf16 %v702, %v699
  %v786 = vunpack.c.l.b16 %v779
  %v787 = vunpack.c.l.b16 %v780
  %v788 = vunpack.c.l.b16 %v781
  %v789 = vpack.c.b16 %v787, %v786
  %v790 = vpack.c.b16 %v788, %v788
  %v792 = vsel %vm219, %v789, 0
  %v795 = vsel %vm219, %v790, 0
  %797 = vmatprep.subr.bf16.mxu0 0
  %798 = vmatpush1.bf16.msra.mxu0 %v782
  %799 = vmatprep.subr.bf16.mxu0 0
  %800 = vmatpush1.bf16.msra.mxu0 0
  %801 = vmatprep.subr.bf16.mxu0 0
  %802 = vmatpush1.bf16.msra.mxu0 0
  %803 = vmatprep.subr.bf16.mxu0 0
  %804 = vmatpush1.bf16.msra.mxu0 0
  %805 = vmatprep.subr.bf16.mxu0 0
  %806 = vmatpush1.bf16.msra.mxu0 0
  %807 = vmatprep.subr.bf16.mxu0 0
  %808 = vmatpush1.bf16.msra.mxu0 0
  %809 = vmatprep.subr.bf16.mxu0 0
  %810 = vmatpush1.bf16.msra.mxu0 0
  %811 = vmatprep.subr.bf16.mxu0 0
  %812 = vmatpush1.bf16.msra.mxu0 0
  %813 = vmatprep.subr.bf16.mxu0 0
  %814 = vmatpush1.bf16.msra.mxu0 0
  %815 = vmatprep.subr.bf16.mxu0 0
  %816 = vmatpush1.bf16.msra.mxu0 0
  %817 = vmatprep.subr.bf16.mxu0 0
  %818 = vmatpush1.bf16.msra.mxu0 0
  %819 = vmatprep.subr.bf16.mxu0 0
  %820 = vmatpush1.bf16.msra.mxu0 0
  %821 = vmatprep.subr.bf16.mxu0 0
  %822 = vmatpush1.bf16.msra.mxu0 0
  %823 = vmatprep.subr.bf16.mxu0 0
  %824 = vmatpush1.bf16.msra.mxu0 0
  %825 = vmatprep.subr.bf16.mxu0 0
  %826 = vmatpush1.bf16.msra.mxu0 0
  %827 = vmatprep.subr.bf16.mxu0 0
  %828 = vmatpush1.bf16.msra.mxu0 0
  %829 = vmatprep.mubr.bf16.mxu0 0
  %830 = vmatmul.mubr.bf16.gmra.mrb[0].mxu0 %v792
  %v831 = vpop.f32.mrb[0].mxu0
  %v832 = vadd.f32 0.0, %v831
  %v833 = vpop.f32.mrb[0].mxu0
  %v834 = vpop.f32.mrb[0].mxu0
  %v835 = vadd.f32 0.0, %v834
  %v836 = vpop.f32.mrb[0].mxu0
  %837 = vmatprep.mubr.bf16.mxu0 0
  %838 = vmatmul.mubr.bf16.gmra.mrb[0].mxu0 %v795
  %v839 = vpop.f32.mrb[0].mxu0
  %v840 = vadd.f32 0.0, %v839
  %v841 = vpop.f32.mrb[0].mxu0
  %v842 = vpop.f32.mrb[0].mxu0
  %v843 = vpop.f32.mrb[0].mxu0
  %844 = vdwg.mxu0
  %v845 = vpack.c.bf16 %v769, %v766
  %v846 = vpack.c.bf16 %v774, %v774
  %v847 = vld [vmem:[%s12] sm:$0xf]
  %v848 = vld [vmem:[%s12 + $0x4] sm:$0xf]
  %v849 = vld [vmem:[%s12 + $0x8] sm:$0xf]
  %v850 = vld [vmem:[%s12 + $0xc] sm:$0xf]
  %v851 = vld [vmem:[%s12 + $0x10] sm:$0xf]
  %v852 = vld [vmem:[%s12 + $0x14] sm:$0xf]
  %v853 = vld [vmem:[%s12 + $0x18] sm:$0xf]
  %v854 = vld [vmem:[%s12 + $0x1c] sm:$0xf]
  %v855 = vld [vmem:[%s12 + $0x20] sm:$0xf]
  %v856 = vld [vmem:[%s12 + $0x24] sm:$0xf]
  %v857 = vld [vmem:[%s12 + $0x28] sm:$0xf]
  %v858 = vld [vmem:[%s12 + $0x2c] sm:$0xf]
  %v859 = vld [vmem:[%s12 + $0x30] sm:$0xf]
  %v860 = vld [vmem:[%s12 + $0x34] sm:$0xf]
  %v861 = vld [vmem:[%s12 + $0x38] sm:$0xf]
  %v862 = vld [vmem:[%s12 + $0x3c] sm:$0xf]
  %v863 = vpack.c.bf16 %v835, %v832
  %v864 = vpack.c.bf16 %v840, %v840
  %v865 = vld [vmem:[%s13] sm:$0xf]
  %v866 = vld [vmem:[%s13 + $0x4] sm:$0xf]
  %v867 = vld [vmem:[%s13 + $0x8] sm:$0xf]
  %v868 = vld [vmem:[%s13 + $0xc] sm:$0xf]
  %v869 = vld [vmem:[%s13 + $0x10] sm:$0xf]
  %v870 = vld [vmem:[%s13 + $0x14] sm:$0xf]
  %v871 = vld [vmem:[%s13 + $0x18] sm:$0xf]
  %v872 = vld [vmem:[%s13 + $0x1c] sm:$0xf]
  %v873 = vld [vmem:[%s13 + $0x20] sm:$0xf]
  %v874 = vld [vmem:[%s13 + $0x24] sm:$0xf]
  %v875 = vld [vmem:[%s13 + $0x28] sm:$0xf]
  %v876 = vld [vmem:[%s13 + $0x2c] sm:$0xf]
  %v877 = vld [vmem:[%s13 + $0x30] sm:$0xf]
  %v878 = vld [vmem:[%s13 + $0x34] sm:$0xf]
  %v879 = vld [vmem:[%s13 + $0x38] sm:$0xf]
  %v880 = vld [vmem:[%s13 + $0x3c] sm:$0xf]
  %v897 = vunpack.c.l.b16 %v865
  %v898 = vunpack.c.l.b16 %v866
  %v899 = vunpack.c.l.b16 %v867
  %v900 = vunpack.c.l.b16 %v868
  %v901 = vunpack.c.l.b16 %v869
  %v902 = vunpack.c.l.b16 %v870
  %v903 = vunpack.c.l.b16 %v871
  %v904 = vunpack.c.l.b16 %v872
  %v905 = vunpack.c.l.b16 %v873
  %v906 = vunpack.c.l.b16 %v874
  %v907 = vunpack.c.l.b16 %v875
  %v908 = vunpack.c.l.b16 %v876
  %v909 = vunpack.c.l.b16 %v877
  %v910 = vunpack.c.l.b16 %v878
  %v911 = vunpack.c.l.b16 %v879
  %v912 = vunpack.c.l.b16 %v880
  %v913 = vpack.c.b16 %v898, %v897
  %v914 = vpack.c.b16 %v900, %v899
  %v915 = vpack.c.b16 %v902, %v901
  %v916 = vpack.c.b16 %v904, %v903
  %v917 = vpack.c.b16 %v906, %v905
  %v918 = vpack.c.b16 %v908, %v907
  %v919 = vpack.c.b16 %v910, %v909
  %v920 = vpack.c.b16 %v912, %v911
  %929 = vmatprep.subr.bf16.mxu0 0
  %930 = vmatpush1.bf16.msra.mxu0 %v913
  %931 = vmatprep.subr.bf16.mxu0 0
  %932 = vmatpush1.bf16.msra.mxu0 %v914
  %933 = vmatprep.subr.bf16.mxu0 0
  %934 = vmatpush1.bf16.msra.mxu0 %v915
  %935 = vmatprep.subr.bf16.mxu0 0
  %936 = vmatpush1.bf16.msra.mxu0 %v916
  %937 = vmatprep.subr.bf16.mxu0 0
  %938 = vmatpush1.bf16.msra.mxu0 %v917
  %939 = vmatprep.subr.bf16.mxu0 0
  %940 = vmatpush1.bf16.msra.mxu0 %v918
  %941 = vmatprep.subr.bf16.mxu0 0
  %942 = vmatpush1.bf16.msra.mxu0 %v919
  %943 = vmatprep.subr.bf16.mxu0 0
  %944 = vmatpush1.bf16.msra.mxu0 %v920
  %945 = vmatprep.subr.bf16.mxu0 0
  %946 = vmatpush1.bf16.msra.mxu0 0
  %947 = vmatprep.subr.bf16.mxu0 0
  %948 = vmatpush1.bf16.msra.mxu0 0
  %949 = vmatprep.subr.bf16.mxu0 0
  %950 = vmatpush1.bf16.msra.mxu0 0
  %951 = vmatprep.subr.bf16.mxu0 0
  %952 = vmatpush1.bf16.msra.mxu0 0
  %953 = vmatprep.subr.bf16.mxu0 0
  %954 = vmatpush1.bf16.msra.mxu0 0
  %955 = vmatprep.subr.bf16.mxu0 0
  %956 = vmatpush1.bf16.msra.mxu0 0
  %957 = vmatprep.subr.bf16.mxu0 0
  %958 = vmatpush1.bf16.msra.mxu0 0
  %959 = vmatprep.subr.bf16.mxu0 0
  %960 = vmatpush1.bf16.msra.mxu0 0
  %961 = vmatprep.mubr.bf16.mxu0 0
  %962 = vmatmul.mubr.bf16.gmra.mrb[0].mxu0 %v863
  %v963 = vpop.f32.mrb[0].mxu0
  %v964 = vadd.f32 0.0, %v963
  %v965 = vpop.f32.mrb[0].mxu0
  %v966 = vpop.f32.mrb[0].mxu0
  %v967 = vadd.f32 0.0, %v966
  %v968 = vpop.f32.mrb[0].mxu0
  %969 = vmatprep.mubr.bf16.mxu0 0
  %970 = vmatmul.mubr.bf16.gmra.mrb[0].mxu0 %v864
  %v971 = vpop.f32.mrb[0].mxu0
  %v972 = vadd.f32 0.0, %v971
  %v973 = vpop.f32.mrb[0].mxu0
  %v974 = vpop.f32.mrb[0].mxu0
  %v975 = vpop.f32.mrb[0].mxu0
  %976 = vdwg.mxu0
  %v993 = vunpack.c.l.b16 %v847
  %v994 = vunpack.c.l.b16 %v848
  %v995 = vunpack.c.l.b16 %v849
  %v996 = vunpack.c.l.b16 %v850
  %v997 = vunpack.c.l.b16 %v851
  %v998 = vunpack.c.l.b16 %v852
  %v999 = vunpack.c.l.b16 %v853
  %v1000 = vunpack.c.l.b16 %v854
  %v1001 = vunpack.c.l.b16 %v855
  %v1002 = vunpack.c.l.b16 %v856
  %v1003 = vunpack.c.l.b16 %v857
  %v1004 = vunpack.c.l.b16 %v858
  %v1005 = vunpack.c.l.b16 %v859
  %v1006 = vunpack.c.l.b16 %v860
  %v1007 = vunpack.c.l.b16 %v861
  %v1008 = vunpack.c.l.b16 %v862
  %v1009 = vpack.c.b16 %v994, %v993
  %v1010 = vpack.c.b16 %v996, %v995
  %v1011 = vpack.c.b16 %v998, %v997
  %v1012 = vpack.c.b16 %v1000, %v999
  %v1013 = vpack.c.b16 %v1002, %v1001
  %v1014 = vpack.c.b16 %v1004, %v1003
  %v1015 = vpack.c.b16 %v1006, %v1005
  %v1016 = vpack.c.b16 %v1008, %v1007
  %1025 = vmatprep.subr.bf16.mxu0 0
  %1026 = vmatpush1.bf16.msra.mxu0 %v1009
  %1027 = vmatprep.subr.bf16.mxu0 0
  %1028 = vmatpush1.bf16.msra.mxu0 %v1010
  %1029 = vmatprep.subr.bf16.mxu0 0
  %1030 = vmatpush1.bf16.msra.mxu0 %v1011
  %1031 = vmatprep.subr.bf16.mxu0 0
  %1032 = vmatpush1.bf16.msra.mxu0 %v1012
  %1033 = vmatprep.subr.bf16.mxu0 0
  %1034 = vmatpush1.bf16.msra.mxu0 %v1013
  %1035 = vmatprep.subr.bf16.mxu0 0
  %1036 = vmatpush1.bf16.msra.mxu0 %v1014
  %1037 = vmatprep.subr.bf16.mxu0 0
  %1038 = vmatpush1.bf16.msra.mxu0 %v1015
  %1039 = vmatprep.subr.bf16.mxu0 0
  %1040 = vmatpush1.bf16.msra.mxu0 %v1016
  %1041 = vmatprep.subr.bf16.mxu0 0
  %1042 = vmatpush1.bf16.msra.mxu0 0
  %1043 = vmatprep.subr.bf16.mxu0 0
  %1044 = vmatpush1.bf16.msra.mxu0 0
  %1045 = vmatprep.subr.bf16.mxu0 0
  %1046 = vmatpush1.bf16.msra.mxu0 0
  %1047 = vmatprep.subr.bf16.mxu0 0
  %1048 = vmatpush1.bf16.msra.mxu0 0
  %1049 = vmatprep.subr.bf16.mxu0 0
  %1050 = vmatpush1.bf16.msra.mxu0 0
  %1051 = vmatprep.subr.bf16.mxu0 0
  %1052 = vmatpush1.bf16.msra.mxu0 0
  %1053 = vmatprep.subr.bf16.mxu0 0
  %1054 = vmatpush1.bf16.msra.mxu0 0
  %1055 = vmatprep.subr.bf16.mxu0 0
  %1056 = vmatpush1.bf16.msra.mxu0 0
  %1057 = vmatprep.mubr.bf16.mxu0 0
  %1058 = vmatmul.mubr.bf16.gmra.mrb[0].mxu0 %v845
  %v1059 = vpop.f32.mrb[0].mxu0
  %v1060 = vadd.f32 %v964, %v1059
  %v1061 = vpop.f32.mrb[0].mxu0
  %v1062 = vpop.f32.mrb[0].mxu0
  %v1063 = vadd.f32 %v967, %v1062
  %v1064 = vpop.f32.mrb[0].mxu0
  %1065 = vmatprep.mubr.bf16.mxu0 0
  %1066 = vmatmul.mubr.bf16.gmra.mrb[0].mxu0 %v846
  %v1067 = vpop.f32.mrb[0].mxu0
  %v1068 = vadd.f32 %v972, %v1067
  %v1069 = vpop.f32.mrb[0].mxu0
  %v1070 = vpop.f32.mrb[0].mxu0
  %v1071 = vpop.f32.mrb[0].mxu0
  %1072 = vdwg.mxu0
  %v1073 = vld [vmem:[%s14] sm:$0x1]
  %v1075 = vlaneseq
  %v1076 = vshrl.u32 %v1075, 7
  %v1077 = vsub.s32 0, %v1076
  %v1078 = vrot.slane %v1073, %v1077
  %v1080 = vadd.f32 %v1060, %v1078
  %v1081 = vadd.f32 %v1063, %v1078
  %v1082 = vadd.f32 %v1068, %v1078
  %1083 = vst [vmem:[%s15] sm:$0xff] %v1080
  %1084 = vst [vmem:[%s15 + $0x8] sm:$0xff] %v1081
  %1085 = vst [vmem:[%s15 + $0x10] sm:$0xff] %v1082
  // Predicated region
  $region62: #{model_forward.1} parent=0 // pred_check
    _
  $region63: #{model_forward.1} parent=0 // pred_check_branch
    %1087 = sbr.rel (0) target = $region65
  $region64: #{model_forward.1} parent=0 // pred_region
    _
  $region65: #{model_forward.1} parent=0 // pred_fallthru
    _
  // Predicated region
  $region66: #{model_forward.1} parent=0 // pred_check
    _
  $region67: #{model_forward.1} parent=0 // pred_check_branch
    %1089 = sbr.rel (0) target = $region69
  $region68: #{model_forward.1} parent=0 // pred_region
    _
  $region69: #{model_forward.1} parent=0 // pred_fallthru
    _

</llo_original>
